<compile_context>
chip_gen: v6e
topology: v6e:2x2x1
jax: 0.10.0
libtpu: 0.0.40
codegen_flags: <defaults>
</compile_context>

<pallas_src>
import jax
import jax.numpy as jnp
from jax.experimental import pallas as pl
from jax.experimental.pallas import tpu as pltpu

_EPS_MSG = 1e-7      # GENConv message epsilon
_EXP_CLAMP = -60.0   # keeps a whole neighborhood from underflowing to den == 0
_LANE = 128


def _round_up(x, m):
    return (x + m - 1) // m * m


def _pad2(a, rows, cols, dtype=jnp.float32):
    out = jnp.zeros((rows, cols), jnp.float32).at[: a.shape[0], : a.shape[1]].set(a)
    return out.astype(dtype)


def _glorot(key, fan_in, fan_out):
    limit = (6.0 / (fan_in + fan_out)) ** 0.5
    return jax.random.uniform(key, (fan_in, fan_out), jnp.float32, -limit, limit)


def _full_spec(shape, grid_rank):
    # Whole-array (grid-invariant) input.
    # TODO(synk): mark these pipeline_mode=pl.Buffered(1) (single buffer) once verified
    # against the installed Mosaic version; halves their VMEM footprint.
    zeros = (0,) * len(shape)
    if grid_rank == 1:
        return pl.BlockSpec(shape, lambda i: zeros)
    return pl.BlockSpec(shape, lambda i, k: zeros)


# --------------------------------------------------------------------------------------
# Stage 1: per-source messages m = relu(lin_src(x)) + eps, and running global z-max.
# --------------------------------------------------------------------------------------
def _make_src_msg_kernel(has_lin):
    def kernel(*refs):
        if has_lin:
            x_ref, w_src_ref, t_ref, m_ref, zmax_ref = refs
        else:
            x_ref, t_ref, m_ref, zmax_ref = refs

        if has_lin:
            x_src = jnp.dot(x_ref[...], w_src_ref[...],
                            preferred_element_type=jnp.float32)
        else:   # in_channels == out_channels -> lin_src is identity: no matmul
            x_src = x_ref[...].astype(jnp.float32)

        m = jnp.maximum(x_src, 0.0) + _EPS_MSG
        m_ref[...] = m

        # Running per-channel max of z = t*m over ALL source rows (softmax shift).
        # TODO(synk): exact per-destination-neighborhood max (PyG scatter-softmax) is not
        # expressible in the dense-matmul formulation; the global shift cancels in
        # num/den and the -60 clamp keeps far-below-max neighborhoods from zeroing out.
        z = t_ref[0, 0] * m
        tile_max = jnp.max(z, axis=0, keepdims=True)

        @pl.when(pl.program_id(0) == 0)
        def _():
            zmax_ref[...] = tile_max

        @pl.when(pl.program_id(0) > 0)
        def _():
            zmax_ref[...] = jnp.maximum(zmax_ref[...], tile_max)

    return kernel


# --------------------------------------------------------------------------------------
# Stage 2: rhs = [e*m | e] (bf16, lane-dense), built once per layer.
# --------------------------------------------------------------------------------------
def _rhs_kernel(m_ref, zmax_ref, t_ref, rhs_ref):
    m = m_ref[...]
    z = t_ref[0, 0] * m
    e = jnp.exp(jnp.maximum(z - zmax_ref[...], _EXP_CLAMP))
    c = m.shape[1]
    rhs_ref[:, :c] = (e * m).astype(rhs_ref.dtype)
    rhs_ref[:, c:] = e.astype(rhs_ref.dtype)


# --------------------------------------------------------------------------------------
# Stage 3: softmax aggregation (K-tiled, f32 accumulator) + residual + MLP + ReLU.
# --------------------------------------------------------------------------------------
def _make_aggr_kernel(has_lin):
    def kernel(*refs):
        if has_lin:
            (x_ref, a_ref, rhs_ref, wdst_ref, w1_ref, bnsh_ref, w2_ref,
             out_ref, acc_ref) = refs
        else:
            x_ref, a_ref, rhs_ref, w1_ref, bnsh_ref, w2_ref, out_ref, acc_ref = refs

        k = pl.program_id(1)

        @pl.when(k == 0)
        def _():
            acc_ref[...] = jnp.zeros_like(acc_ref)

        # [num | den] partial = A(tile, tk) @ [e*m | e](tk, 2c): bf16 operands, f32 acc.
        acc_ref[...] += jnp.dot(a_ref[...], rhs_ref[...],
                                preferred_element_type=jnp.float32)

        @pl.when(k == pl.num_programs(1) - 1)
        def _():
            c = out_ref.shape[1]
            nd = acc_ref[...]
            num, den = nd[:, :c], nd[:, c:]
            # EUP reciprocal instead of VPU divide; isolated destinations -> 0.
            agg = num * pl.reciprocal(jnp.maximum(den, 1e-30), approx=True)

            if has_lin:
                x_dst = jnp.dot(x_ref[...], wdst_ref[...],
                                preferred_element_type=jnp.float32)
            else:   # identity lin_dst
                x_dst = x_ref[...].astype(jnp.float32)
            h = agg + x_dst

            # GENConv 2-layer MLP (bias=False): Linear -> BN(eval, scale folded into w1,
            # shift kept as bias) -> ReLU -> Linear
            h1 = jnp.dot(h.astype(jnp.bfloat16), w1_ref[...],
                         preferred_element_type=jnp.float32) + bnsh_ref[...]
            h1 = jnp.maximum(h1, 0.0)
            h2 = jnp.dot(h1.astype(jnp.bfloat16), w2_ref[...],
                         preferred_element_type=jnp.float32)

            # decoder-level ReLU; Dropout is identity in inference mode
            out_ref[...] = jnp.maximum(h2, 0.0).astype(out_ref.dtype)

    return kernel


def genconv_relu(x_pad, adj_bf16, p, *, tile, tk, src_tile=128):
    """One fused GENConv(softmax, learn_t) + ReLU layer (three pallas_calls)."""
    n_pad, c_in_pad = x_pad.shape
    c_out_pad = p["w2"].shape[1]
    c_mid_pad = p["w1"].shape[1]
    has_lin = "w_src" in p
    n_dst, n_k, n_src = n_pad // tile, n_pad // tk, n_pad // src_tile

    # ---- stage 1: source messages + global z-max --------------------------------------
    s1_args, s1_specs = [x_pad], [pl.BlockSpec((src_tile, c_in_pad), lambda i: (i, 0))]
    if has_lin:
        s1_args.append(p["w_src"])
        s1_specs.append(_full_spec(p["w_src"].shape, 1))
    s1_args.append(p["t"])
    s1_specs.append(pl.BlockSpec(memory_space=pltpu.MemorySpace.SMEM))

    m, zmax = pl.pallas_call(
        _make_src_msg_kernel(has_lin),
        out_shape=(jax.ShapeDtypeStruct((n_pad, c_out_pad), jnp.float32),
                   jax.ShapeDtypeStruct((1, c_out_pad), jnp.float32)),
        grid=(n_src,),
        in_specs=s1_specs,
        out_specs=(pl.BlockSpec((src_tile, c_out_pad), lambda i: (i, 0)),
                   pl.BlockSpec((1, c_out_pad), lambda i: (0, 0))),
        compiler_params=pltpu.CompilerParams(dimension_semantics=("arbitrary",)),
    )(*s1_args)

    # ---- stage 2: rhs = [e*m | e] bf16, built once per layer --------------------------
    rhs = pl.pallas_call(
        _rhs_kernel,
        out_shape=jax.ShapeDtypeStruct((n_pad, 2 * c_out_pad), jnp.bfloat16),
        grid=(n_src,),
        in_specs=[pl.BlockSpec((src_tile, c_out_pad), lambda i: (i, 0)),
                  _full_spec((1, c_out_pad), 1),
                  pl.BlockSpec(memory_space=pltpu.MemorySpace.SMEM)],
        out_specs=pl.BlockSpec((src_tile, 2 * c_out_pad), lambda i: (i, 0)),
        compiler_params=pltpu.CompilerParams(dimension_semantics=("parallel",)),
    )(m, zmax, p["t"])

    # ---- stage 3: aggregation + residual + MLP + ReLU ----------------------------------
    args = [x_pad, adj_bf16, rhs]
    in_specs = [
        pl.BlockSpec((tile, c_in_pad), lambda i, k: (i, 0)),      # dst rows of x
        pl.BlockSpec((tile, tk), lambda i, k: (i, k)),            # A slab (dominant stream)
        pl.BlockSpec((tk, 2 * c_out_pad), lambda i, k: (k, 0)),   # [e*m | e]
    ]
    if has_lin:
        args.append(p["w_dst"])
        in_specs.append(_full_spec(p["w_dst"].shape, 2))
    args += [p["w1"], p["bn_shift"], p["w2"]]
    in_specs += [_full_spec(p["w1"].shape, 2), _full_spec(p["bn_shift"].shape, 2),
                 _full_spec(p["w2"].shape, 2)]

    # Explicit VMEM budget: double-buffered pipelined blocks + resident weights + scratch.
    vmem = (2 * tile * c_in_pad * 2 + 2 * tile * tk * 2 + 2 * tk * 2 * c_out_pad * 2
            + 2 * tile * c_out_pad * 2 + tile * 2 * c_out_pad * 4
            + 2 * (2 * c_out_pad * c_mid_pad * 2 + c_mid_pad * 4
                   + (c_in_pad * c_out_pad * 2 if has_lin else 0)))
    vmem_limit = int(min(max(2 * vmem, 32 << 20), 48 << 20))

    flops = 2 * n_pad * n_pad * 2 * c_out_pad                                # aggregation
    flops += 2 * n_pad * (c_out_pad * c_mid_pad + c_mid_pad * c_out_pad)     # MLP
    if has_lin:
        flops += 2 * n_pad * c_in_pad * c_out_pad                            # lin_dst
    bytes_accessed = (adj_bf16.size * 2 + n_dst * rhs.size * 2 + x_pad.size * 2
                      + n_pad * c_out_pad * 2
                      + sum(int(v.size) * v.dtype.itemsize for v in p.values()))

    return pl.pallas_call(
        _make_aggr_kernel(has_lin),
        out_shape=jax.ShapeDtypeStruct((n_pad, c_out_pad), jnp.bfloat16),
        grid=(n_dst, n_k),
        in_specs=in_specs,
        out_specs=pl.BlockSpec((tile, c_out_pad), lambda i, k: (i, 0)),
        scratch_shapes=[pltpu.VMEM((tile, 2 * c_out_pad), jnp.float32)],
        compiler_params=pltpu.CompilerParams(
            dimension_semantics=("parallel", "arbitrary"),
            vmem_limit_bytes=vmem_limit),
        cost_estimate=pl.CostEstimate(flops=int(flops),
                                      transcendentals=int(n_pad * c_out_pad),
                                      bytes_accessed=int(bytes_accessed)),
    )(*args)


def init_gcn_decoder_params(key, hidden_channels, out_channels, n_layers, n_aggr):
    assert n_layers == 2, "kernel implements the default 2-layer GENConv MLP"
    params = []
    for a in range(n_aggr):
        c_in = hidden_channels
        c_out = hidden_channels if a < n_aggr - 1 else out_channels
        c_mid = 2 * c_out                                    # GENConv expansion=2
        cip, cop, cmp_ = (_round_up(c_in, _LANE), _round_up(c_out, _LANE),
                          _round_up(c_mid, _LANE))
        key, k1, k2, k3, k4 = jax.random.split(key, 5)
        p = {"t": jnp.ones((1, 1), jnp.float32)}             # learn_t=True, init t=1.0
        if c_in != c_out:                                    # else lin_src/lin_dst == identity
            p["w_src"] = _pad2(_glorot(k1, c_in, c_out), cip, cop, jnp.bfloat16)
            p["w_dst"] = _pad2(_glorot(k2, c_in, c_out), cip, cop, jnp.bfloat16)
        w1 = _glorot(k3, c_out, c_mid)
        w2 = _glorot(k4, c_mid, c_out)
        # BatchNorm1d(c_mid), eval mode: fold scale into w1, keep shift as a bias.
        # TODO(synk): real checkpoints must supply their running_mean / running_var here.
        gamma = jnp.ones((c_mid,), jnp.float32)
        beta = jnp.zeros((c_mid,), jnp.float32)
        run_mean = jnp.zeros((c_mid,), jnp.float32)
        run_var = jnp.ones((c_mid,), jnp.float32)
        bn_scale = gamma / jnp.sqrt(run_var + 1e-5)
        bn_shift = beta - run_mean * bn_scale
        p["w1"] = _pad2(w1 * bn_scale[None, :], cop, cmp_, jnp.bfloat16)
        p["bn_shift"] = _pad2(bn_shift[None, :], 1, cmp_)
        p["w2"] = _pad2(w2, cmp_, cop, jnp.bfloat16)
        params.append(p)
    return params


def build_dense_adjacency(edge_index, num_nodes, *, pad_to=_LANE):
    """Dense A[dst, src] = edge multiplicity, zero-padded, bf16 (exact for small counts).
    Build ONCE per static graph and reuse across forward calls (hoisted O(N^2) scatter).
    # TODO(synk): fp8(e4m3) A for v7x and a CSR / PrefetchScalarGridSpec gather path for
    # sparse graphs are not implemented; the dense formulation is O(N^2)."""
    n_pad = _round_up(num_nodes, pad_to)
    src, dst = edge_index[0], edge_index[1]
    adj = jnp.zeros((n_pad, n_pad), jnp.float32).at[dst, src].add(1.0)
    return adj.astype(jnp.bfloat16)


def _pick_block(n_pad, desired):
    b = min(desired, n_pad)
    while n_pad % b:
        b //= 2
    return max(b, _LANE)


def _default_dst_tile():
    """256-row dst tiles on v6e/v7x (2x256 MXU), 128 on earlier generations."""
    try:
        kind = jax.devices()[0].device_kind.lower()
    except Exception:
        return 256
    return 128 if any(v in kind for v in ("v2", "v3", "v4", "v5")) else 256


def gcn_decoder_forward(x_hat, adj_bf16, params, out_channels, *, tile=None, tk=512):
    """adj_bf16 is the prebuilt (n_pad, n_pad) bf16 adjacency from build_dense_adjacency.
    # TODO(synk): edge_attr path (lin_edge, x_j + edge_attr) not implemented; the decoder
    # is exercised with edge_attr=None, as in the PyTorch call site."""
    n, c_in = x_hat.shape
    n_pad = adj_bf16.shape[0]
    assert adj_bf16.shape == (n_pad, n_pad) and n_pad % _LANE == 0 and n_pad >= n
    if tile is None:
        tile = _default_dst_tile()
    assert tile % _LANE == 0 and (tile & (tile - 1)) == 0, \
        "dst tile must be a power-of-two multiple of 128"
    assert tk % _LANE == 0 and (tk & (tk - 1)) == 0, \
        "source (K) tile must be a power-of-two multiple of 128"
    tile = _pick_block(n_pad, tile)
    tk = _pick_block(n_pad, tk)
    if n_pad // tile < 2 and n_pad >= 2 * _LANE:   # v7x megacore: keep >=2 parallel tiles
        tile //= 2

    c_in_pad = _round_up(c_in, _LANE)
    x = _pad2(x_hat, n_pad, c_in_pad, jnp.bfloat16)   # bf16 activations between layers
    for p in params:
        x = genconv_relu(x, adj_bf16, p, tile=tile, tk=tk)
    return x[:n, :out_channels].astype(jnp.float32)


if __name__ == "__main__":
    key = jax.random.PRNGKey(0)
    N, E = 200, 600
    hidden_channels, out_channels = 32, 16
    n_layers, n_aggr, dropout = 2, 2, 0.1

    kx, ks, kd, kp = jax.random.split(key, 4)
    x_hat = jax.random.normal(kx, (N, hidden_channels), jnp.float32)
    src = jax.random.randint(ks, (E,), 0, N)
    dst = jax.random.randint(kd, (E,), 0, N)
    edge_index = jnp.stack([src, dst]).astype(jnp.int32)   # PyG: row0 = src, row1 = dst

    params = init_gcn_decoder_params(kp, hidden_channels, out_channels,
                                     n_layers, n_aggr)
    adj = build_dense_adjacency(edge_index, N)   # built once (static graph), reused

    # N=200 pads to 256 rows; tile=tk=128 -> a 2x2 (dst "parallel" x K "arbitrary") grid
    # that exercises the accumulator init/finalize and the running global-max pass even
    # at this small size.  For real sizes leave tile/tk at their defaults.
    y = gcn_decoder_forward(x_hat, adj, params, out_channels, tile=128, tk=128)
    y = jax.block_until_ready(y)
    assert y.shape == (N, out_channels)
    assert bool(jnp.all(jnp.isfinite(y)))
    print("KERNEL_OK")
</pallas_src>

<mosaic_0001>
module attributes {stable_mosaic.version = 11 : i64} {
  func.func @kernel(%arg0: i32, %arg1: memref<128x128xbf16, #tpu.memory_space<vmem>>, %arg2: memref<1x1xf32, #tpu.memory_space<smem>>, %arg3: memref<128x128xf32, #tpu.memory_space<vmem>>, %arg4: memref<1x128xf32, #tpu.memory_space<vmem>>) attributes {dimension_semantics = [#tpu.dimension_semantics<arbitrary>], iteration_bounds = array<i64: 2>, scalar_prefetch = 0 : i64, scratch_operands = 0 : i64, tpu.core_type = #tpu.core_type<tc>, window_params = [{transform_indices = @transform_0, window_bounds = array<i64: 128, 128>}, {transform_indices = @transform_1, window_bounds = array<i64: 1, 1>}, {transform_indices = @transform_2, window_bounds = array<i64: 128, 128>}, {pipeline_mode = #tpu.pipeline_mode<synchronous>, transform_indices = @transform_3, window_bounds = array<i64: 1, 128>}]} {
    %c0 = arith.constant 0 : index
    %c0_0 = arith.constant 0 : index
    %0 = vector.load %arg1[%c0, %c0_0] : memref<128x128xbf16, #tpu.memory_space<vmem>>, vector<128x128xbf16>
    %1 = arith.extf %0 : vector<128x128xbf16> to vector<128x128xf32>
    %cst = arith.constant 0.000000e+00 : f32
    %2 = vector.broadcast %cst : f32 to vector<128x128xf32>
    %3 = arith.maximumf %1, %2 : vector<128x128xf32>
    %cst_1 = arith.constant 1.000000e-07 : f32
    %4 = vector.broadcast %cst_1 : f32 to vector<128x128xf32>
    %5 = arith.addf %3, %4 : vector<128x128xf32>
    %c0_2 = arith.constant 0 : index
    %c0_3 = arith.constant 0 : index
    %6 = vector.load %arg3[%c0_2, %c0_3] : memref<128x128xf32, #tpu.memory_space<vmem>>, vector<128x128xf32>
    tpu.vector_store %arg3[%c0_2, %c0_3], %5 {strides = array<i32>} : memref<128x128xf32, #tpu.memory_space<vmem>>, vector<128x128xf32>,
    %c0_4 = arith.constant 0 : index
    %c0_5 = arith.constant 0 : index
    %7 = memref.load %arg2[%c0_4, %c0_5] : memref<1x1xf32, #tpu.memory_space<smem>>
    %8 = vector.broadcast %7 : f32 to vector<128x128xf32>
    %9 = arith.mulf %8, %5 : vector<128x128xf32>
    %cst_6 = arith.constant dense<0xFF800000> : vector<128xf32>
    %10 = vector.multi_reduction <maximumf>, %9, %cst_6 [0] : vector<128x128xf32> to vector<128xf32>
    %11 = vector.shape_cast %10 : vector<128xf32> to vector<1x128xf32>
    %c0_i32 = arith.constant 0 : i32
    %12 = arith.cmpi eq, %arg0, %c0_i32 : i32
    %13 = arith.extui %12 : i1 to i32
    %c0_i32_7 = arith.constant 0 : i32
    %14 = arith.cmpi ne, %13, %c0_i32_7 : i32
    scf.if %14 {
      %c0_10 = arith.constant 0 : index
      %c0_11 = arith.constant 0 : index
      %18 = vector.load %arg4[%c0_10, %c0_11] : memref<1x128xf32, #tpu.memory_space<vmem>>, vector<1x128xf32>
      tpu.vector_store %arg4[%c0_10, %c0_11], %11 {strides = array<i32>} : memref<1x128xf32, #tpu.memory_space<vmem>>, vector<1x128xf32>,
    } else {
    }
    %c0_i32_8 = arith.constant 0 : i32
    %15 = arith.cmpi sgt, %arg0, %c0_i32_8 : i32
    %16 = arith.extui %15 : i1 to i32
    %c0_i32_9 = arith.constant 0 : i32
    %17 = arith.cmpi ne, %16, %c0_i32_9 : i32
    scf.if %17 {
      %c0_10 = arith.constant 0 : index
      %c0_11 = arith.constant 0 : index
      %18 = vector.load %arg4[%c0_10, %c0_11] : memref<1x128xf32, #tpu.memory_space<vmem>>, vector<1x128xf32>
      %19 = arith.maximumf %18, %11 : vector<1x128xf32>
      %c0_12 = arith.constant 0 : index
      %c0_13 = arith.constant 0 : index
      %20 = vector.load %arg4[%c0_12, %c0_13] : memref<1x128xf32, #tpu.memory_space<vmem>>, vector<1x128xf32>
      tpu.vector_store %arg4[%c0_12, %c0_13], %19 {strides = array<i32>} : memref<1x128xf32, #tpu.memory_space<vmem>>, vector<1x128xf32>,
    } else {
    }
    return
  }
  func.func @transform_0(%arg0: i32) -> (i32, i32) {
    %c0_i32 = arith.constant 0 : i32
    %c0_i32_0 = arith.constant 0 : i32
    return %arg0, %c0_i32 : i32, i32
  }
  func.func @transform_1(%arg0: i32) -> (i32, i32) {
    %c0_i32 = arith.constant 0 : i32
    %c0_i32_0 = arith.constant 0 : i32
    %c0_i32_1 = arith.constant 0 : i32
    return %c0_i32, %c0_i32_0 : i32, i32
  }
  func.func @transform_2(%arg0: i32) -> (i32, i32) {
    %c0_i32 = arith.constant 0 : i32
    %c0_i32_0 = arith.constant 0 : i32
    return %arg0, %c0_i32 : i32, i32
  }
  func.func @transform_3(%arg0: i32) -> (i32, i32) {
    %c0_i32 = arith.constant 0 : i32
    %c0_i32_0 = arith.constant 0 : i32
    %c0_i32_1 = arith.constant 0 : i32
    return %c0_i32, %c0_i32_0 : i32, i32
  }
}

</mosaic_0001>

<llo_original>
// kernel: tpu_custom_call.1
$region0: #{tpu_custom_call.1}
  #allocation0 [shape = 'u32[]', space=smem, size = 0x4, offset = 0x4, fixed_abs, tag = 'smem constant byte address 0x4 - core index']
  #allocation1 [shape = 'u32[144,128]{1,0:T(1,128)}', space=vmem, size = 0x12000, scoped, tag = 'internal scratch']
  #allocation2 [shape = 'f32[1,1]{1,0:T(1,128)S(6)}', space=smem, size = 0x200, scoped, tag = 'scoped memory for tpu_custom_call.1']
  %s0 = inlined_call_operand.hbm [shape: bf16[256,128], index: 0, kind: input, shape index: {}]
  %s1 = inlined_call_operand.<no memory space> [shape: f32[1,1], index: 1, kind: input, shape index: {}]
  %s2 = inlined_call_operand.hbm [shape: f32[256,128], index: 2, kind: output, shape index: {0}]
  %s3 = inlined_call_operand.hbm [shape: f32[1,128], index: 3, kind: output, shape index: {1}]
  %4 = xla_tuple %s2, %s3
  %s5 = sld [smem:[#allocation0]]
  $region61: #{tpu_custom_call.1} parent=0
    _
  %s7 = ssub.s32 1, %s5
  %s8 = scalar_select 0, %s7, %s5
  %9 = sst [smem:[#allocation2]] %s1
  $region1: #{tpu_custom_call.1} parent=0
    #allocation3 [shape = 'u8[65536]{0}', space=vmem, size = 0x10000, scoped, tag = 'input window, operand 0']
    #allocation4 [shape = 's32[2]{0}', space=sflag, size = 0x8, scoped, tag = 'scoped memory for tpu_custom_call.1']
    #allocation5 [shape = 's32[2]{0}', space=sflag, size = 0x8, scoped, tag = 'scoped memory for tpu_custom_call.1']
    #allocation6 [shape = 'u8[131072]{0}', space=vmem, size = 0x20000, scoped, tag = 'output window, operand 0']
    #allocation7 [shape = 'u8[512]{0}', space=vmem, size = 0x400, scoped, tag = 'output window, operand 1, single buffered']
    #allocation8 [shape = 's32[1]{0}', space=sflag, size = 0x4, scoped, tag = 'scoped memory for tpu_custom_call.1']
    %10 = vsyncpa [#allocation4], 0
    %s11 = scalar_lea.sflag [#allocation4], 1
    %12 = vsyncpa %s11, 0
    %13 = vsyncpa [#allocation5], 0
    %s14 = scalar_lea.sflag [#allocation5], 1
    %15 = vsyncpa %s14, 0
    %16 = vsyncpa [#allocation8], 0
    loop: start=0, step=1, limit=4
    $region2: #{tpu_custom_call.1} parent=1 // loop_pre_header
      _
    $region3: #{tpu_custom_call.1} parent=1 // loop_header
      %s18 = sphi 0, %s22
      %p19 = scmp.ge.s32.totalorder %s18, 4
      %s28 = sphi 0, %s30
      %s31 = sphi 0, %s28
      %s32 = sphi 0, %s31
      %s48 = sphi 0, %s32
      %s52 = sphi 0, %s52
      %s54 = sphi 0, %s52
      %s55 = sphi 0, %s54
      %s69 = sphi 0, %s55
      %s75 = sphi 0, %s77
      %s78 = sphi 0, %s75
      %s79 = sphi 0, %s78
      %s95 = sphi 0, %s79
      %s99 = sphi 0, %s99
      %s101 = sphi 0, %s99
      %s102 = sphi 0, %s101
      %s116 = sphi 0, %s102
    $region4: #{tpu_custom_call.1} parent=1 // loop_header_branch
      %21 = sbr.rel (%p19) target = $region8
    $region5: #{tpu_custom_call.1} parent=1 // loop_body
      %s23 = ssub.s32 %s18, 1
      %s24 = ssub.s32 %s18, 2
      %s25 = sadd.s32 %s18, 1
      %s26 = ssub.s32 %s18, %s25
      %p27 = scmp.eq.s32.totalorder %s26, 0
      %s29 = sadd.s32 %s28, 1
      %s30 = scalar_select %p27, %s28, %s29
      %p33 = pneg %p27
      %p34 = scmp.eq.s32.totalorder %s18, 1
      %p35 = por %p33, %p34
      %p36 = scmp.ne.s32.totalorder %s28, %s31
      %p37 = scmp.eq.s32.totalorder %s18, 0
      %p38 = por %p36, %p37
      %p39 = scmp.ne.s32.totalorder %s28, %s31
      %p40 = scmp.eq.s32.totalorder %s23, 1
      %p41 = por %p39, %p40
      %p42 = scmp.ne.s32.totalorder %s31, %s32
      %p43 = scmp.eq.s32.totalorder %s23, 0
      %p44 = por %p42, %p43
      %p45 = scmp.ne.s32.totalorder %s31, %s32
      %p46 = scmp.eq.s32.totalorder %s24, 1
      %p47 = por %p45, %p46
      %p49 = scmp.ne.s32.totalorder %s32, %s48
      %p50 = scmp.eq.s32.totalorder %s24, 0
      %p51 = por %p49, %p50
      %s53 = sadd.s32 %s52, 1
      %p56 = scmp.eq.s32.totalorder %s18, 1
      %p57 = scmp.ne.s32.totalorder %s52, %s54
      %p58 = scmp.eq.s32.totalorder %s18, 0
      %p59 = por %p57, %p58
      %p60 = scmp.ne.s32.totalorder %s52, %s54
      %p61 = scmp.eq.s32.totalorder %s23, 1
      %p62 = por %p60, %p61
      %p63 = scmp.ne.s32.totalorder %s54, %s55
      %p64 = scmp.eq.s32.totalorder %s23, 0
      %p65 = por %p63, %p64
      %p66 = scmp.ne.s32.totalorder %s54, %s55
      %p67 = scmp.eq.s32.totalorder %s24, 1
      %p68 = por %p66, %p67
      %p70 = scmp.ne.s32.totalorder %s55, %s69
      %p71 = scmp.eq.s32.totalorder %s24, 0
      %p72 = por %p70, %p71
      %s73 = ssub.s32 %s18, %s25
      %p74 = scmp.eq.s32.totalorder %s73, 0
      %s76 = sadd.s32 %s75, 1
      %s77 = scalar_select %p74, %s75, %s76
      %p80 = pneg %p74
      %p81 = scmp.eq.s32.totalorder %s18, 1
      %p82 = por %p80, %p81
      %p83 = scmp.ne.s32.totalorder %s75, %s78
      %p84 = scmp.eq.s32.totalorder %s18, 0
      %p85 = por %p83, %p84
      %p86 = scmp.ne.s32.totalorder %s75, %s78
      %p87 = scmp.eq.s32.totalorder %s23, 1
      %p88 = por %p86, %p87
      %p89 = scmp.ne.s32.totalorder %s78, %s79
      %p90 = scmp.eq.s32.totalorder %s23, 0
      %p91 = por %p89, %p90
      %p92 = scmp.ne.s32.totalorder %s78, %s79
      %p93 = scmp.eq.s32.totalorder %s24, 1
      %p94 = por %p92, %p93
      %p96 = scmp.ne.s32.totalorder %s79, %s95
      %p97 = scmp.eq.s32.totalorder %s24, 0
      %p98 = por %p96, %p97
      %s100 = sadd.s32 %s99, 1
      %p103 = scmp.eq.s32.totalorder %s18, 1
      %p104 = scmp.ne.s32.totalorder %s99, %s101
      %p105 = scmp.eq.s32.totalorder %s18, 0
      %p106 = por %p104, %p105
      %p107 = scmp.ne.s32.totalorder %s99, %s101
      %p108 = scmp.eq.s32.totalorder %s23, 1
      %p109 = por %p107, %p108
      %p110 = scmp.ne.s32.totalorder %s101, %s102
      %p111 = scmp.eq.s32.totalorder %s23, 0
      %p112 = por %p110, %p111
      %p113 = scmp.ne.s32.totalorder %s101, %s102
      %p114 = scmp.eq.s32.totalorder %s24, 1
      %p115 = por %p113, %p114
      %p117 = scmp.ne.s32.totalorder %s102, %s116
      %p118 = scmp.eq.s32.totalorder %s24, 0
      %p119 = por %p117, %p118
      %p120 = scmp.le.s32.totalorder 1, %s18
      %p121 = scmp.lt.s32.totalorder %s18, 3
      %p122 = pnand %p120, %p121
      %p123 = pneg %p122
      // Predicated region
      $region9: #{tpu_custom_call.1} parent=5 // pred_check
        _
      $region10: #{tpu_custom_call.1} parent=5 // pred_check_branch
        %125 = sbr.rel (%p122) target = $region12
      $region11: #{tpu_custom_call.1} parent=5 // pred_region
        %s126 = ssub.s32 %s18, 1
        // Predicated region
        $region13: #{tpu_custom_call.1} parent=11 // pred_check
          %p127 = pneg %p65
        $region14: #{tpu_custom_call.1} parent=11 // pred_check_branch
          %129 = sbr.rel (%p127) target = $region16
        $region15: #{tpu_custom_call.1} parent=11 // pred_region
          _
        $region16: #{tpu_custom_call.1} parent=11 // pred_fallthru
          _
      $region12: #{tpu_custom_call.1} parent=5 // pred_fallthru
        _
      %p130 = scmp.lt.s32.totalorder %s18, 2
      // Predicated region
      $region17: #{tpu_custom_call.1} parent=5 // pred_check
        %p131 = pneg %p130
      $region18: #{tpu_custom_call.1} parent=5 // pred_check_branch
        %133 = sbr.rel (%p131) target = $region20
      $region19: #{tpu_custom_call.1} parent=5 // pred_region
        // Predicated region
        $region21: #{tpu_custom_call.1} parent=19 // pred_check
          %p134 = pneg %p38
        $region22: #{tpu_custom_call.1} parent=19 // pred_check_branch
          %136 = sbr.rel (%p134) target = $region24
        $region23: #{tpu_custom_call.1} parent=19 // pred_region
          %s137 = sand.u32 %s28, 1
          %s138 = scalar_lea.sflag [#allocation4], %s137
          %s139 = sand.u32 %s28, 1
          %s140 = smul.addr %s139, 64
          %s141 = scalar_lea.vmem [#allocation3], %s140
          %s142 = smul.u32 16, %s18
          %s144 = ssub.s32 1024, 1024
          %145 = vsyncadd %s138, %s144
          %s146 = smul.addr %s142, 64
          %s147 = scalar_lea.hbm %s0, %s146
          %s148 = sshll.u32 %s141, 4
          %s149 = int_to_ptr.vmem [resolvable:$true] %s148
          %154 = dma.hbm_to_vmem [thread:$0]  %s147, 1024, %s149, %s138, 64, 64, 4
        $region24: #{tpu_custom_call.1} parent=19 // pred_fallthru
          _
      $region20: #{tpu_custom_call.1} parent=5 // pred_fallthru
        _
      %p155 = scmp.le.s32.totalorder 1, %s18
      %p156 = scmp.lt.s32.totalorder %s18, 3
      %p157 = pnand %p155, %p156
      %p158 = pneg %p157
      // Predicated region
      $region25: #{tpu_custom_call.1} parent=5 // pred_check
        _
      $region26: #{tpu_custom_call.1} parent=5 // pred_check_branch
        %160 = sbr.rel (%p157) target = $region28
      $region27: #{tpu_custom_call.1} parent=5 // pred_region
        %s161 = ssub.s32 %s18, 1
        %s162 = sand.u32 %s31, 1
        %s163 = scalar_lea.sflag [#allocation4], %s162
        %s164 = sand.u32 %s31, 1
        %s165 = smul.addr %s164, 64
        %s166 = scalar_lea.vmem [#allocation3], %s165
        // Predicated region
        $region29: #{tpu_custom_call.1} parent=27 // pred_check
          %p167 = pneg %p44
        $region30: #{tpu_custom_call.1} parent=27 // pred_check_branch
          %169 = sbr.rel (%p167) target = $region32
        $region31: #{tpu_custom_call.1} parent=27 // pred_region
          %170 = dma.done %s163, 1024
        $region32: #{tpu_custom_call.1} parent=27 // pred_fallthru
          _
        %s171 = sand.u32 %s31, 1
        %s172 = scalar_lea.sflag [#allocation4], %s171
        %s173 = sand.u32 %s31, 1
        %s174 = smul.addr %s173, 64
        %s175 = scalar_lea.vmem [#allocation3], %s174
        %p176 = pneg %p44
        %p177 = pneg %p41
        %p178 = pneg %p65
        %p179 = pneg %p62
        %p180 = pneg %p91
        %p181 = pneg %p88
        %s182 = sand.u32 %s78, 1
        %s183 = scalar_lea.sflag [#allocation5], %s182
        %s184 = sand.u32 %s78, 1
        %s185 = smul.addr %s184, 128
        %s186 = scalar_lea.vmem [#allocation6], %s185
        %p187 = pneg %p112
        %p188 = pneg %p109
        %s189 = smul.u32 16, %s23
        %s190 = smul.u32 16, %s23
        %v191 = vld [vmem:[%s166] sm:$0xf]
        %v192 = vld [vmem:[%s166 + $0x4] sm:$0xf]
        %v193 = vld [vmem:[%s166 + $0x8] sm:$0xf]
        %v194 = vld [vmem:[%s166 + $0xc] sm:$0xf]
        %v195 = vld [vmem:[%s166 + $0x10] sm:$0xf]
        %v196 = vld [vmem:[%s166 + $0x14] sm:$0xf]
        %v197 = vld [vmem:[%s166 + $0x18] sm:$0xf]
        %v198 = vld [vmem:[%s166 + $0x1c] sm:$0xf]
        %v199 = vld [vmem:[%s166 + $0x20] sm:$0xf]
        %v200 = vld [vmem:[%s166 + $0x24] sm:$0xf]
        %v201 = vld [vmem:[%s166 + $0x28] sm:$0xf]
        %v202 = vld [vmem:[%s166 + $0x2c] sm:$0xf]
        %v203 = vld [vmem:[%s166 + $0x30] sm:$0xf]
        %v204 = vld [vmem:[%s166 + $0x34] sm:$0xf]
        %v205 = vld [vmem:[%s166 + $0x38] sm:$0xf]
        %v206 = vld [vmem:[%s166 + $0x3c] sm:$0xf]
        %v207 = vunpack.c.l.bf16 %v191
        %v208 = vunpack.c.l.bf16 %v192
        %v209 = vunpack.c.l.bf16 %v193
        %v210 = vunpack.c.l.bf16 %v194
        %v211 = vunpack.c.l.bf16 %v195
        %v212 = vunpack.c.l.bf16 %v196
        %v213 = vunpack.c.l.bf16 %v197
        %v214 = vunpack.c.l.bf16 %v198
        %v215 = vunpack.c.l.bf16 %v199
        %v216 = vunpack.c.l.bf16 %v200
        %v217 = vunpack.c.l.bf16 %v201
        %v218 = vunpack.c.l.bf16 %v202
        %v219 = vunpack.c.l.bf16 %v203
        %v220 = vunpack.c.l.bf16 %v204
        %v221 = vunpack.c.l.bf16 %v205
        %v222 = vunpack.c.l.bf16 %v206
        %v223 = vmax.f32 %v207, 0.0
        %v224 = vmax.f32 %v208, 0.0
        %v225 = vmax.f32 %v209, 0.0
        %v226 = vmax.f32 %v210, 0.0
        %v227 = vmax.f32 %v211, 0.0
        %v228 = vmax.f32 %v212, 0.0
        %v229 = vmax.f32 %v213, 0.0
        %v230 = vmax.f32 %v214, 0.0
        %v231 = vmax.f32 %v215, 0.0
        %v232 = vmax.f32 %v216, 0.0
        %v233 = vmax.f32 %v217, 0.0
        %v234 = vmax.f32 %v218, 0.0
        %v235 = vmax.f32 %v219, 0.0
        %v236 = vmax.f32 %v220, 0.0
        %v237 = vmax.f32 %v221, 0.0
        %v238 = vmax.f32 %v222, 0.0
        %v239 = vadd.f32 %v223, 1e-07
        %v240 = vadd.f32 %v224, 1e-07
        %v241 = vadd.f32 %v225, 1e-07
        %v242 = vadd.f32 %v226, 1e-07
        %v243 = vadd.f32 %v227, 1e-07
        %v244 = vadd.f32 %v228, 1e-07
        %v245 = vadd.f32 %v229, 1e-07
        %v246 = vadd.f32 %v230, 1e-07
        %v247 = vadd.f32 %v231, 1e-07
        %v248 = vadd.f32 %v232, 1e-07
        %v249 = vadd.f32 %v233, 1e-07
        %v250 = vadd.f32 %v234, 1e-07
        %v251 = vadd.f32 %v235, 1e-07
        %v252 = vadd.f32 %v236, 1e-07
        %v253 = vadd.f32 %v237, 1e-07
        %v254 = vadd.f32 %v238, 1e-07
        %255 = vst [vmem:[%s186] sm:$0xff] %v239
        %256 = vst [vmem:[%s186 + $0x8] sm:$0xff] %v240
        %257 = vst [vmem:[%s186 + $0x10] sm:$0xff] %v241
        %258 = vst [vmem:[%s186 + $0x18] sm:$0xff] %v242
        %259 = vst [vmem:[%s186 + $0x20] sm:$0xff] %v243
        %260 = vst [vmem:[%s186 + $0x28] sm:$0xff] %v244
        %261 = vst [vmem:[%s186 + $0x30] sm:$0xff] %v245
        %262 = vst [vmem:[%s186 + $0x38] sm:$0xff] %v246
        %263 = vst [vmem:[%s186 + $0x40] sm:$0xff] %v247
        %264 = vst [vmem:[%s186 + $0x48] sm:$0xff] %v248
        %265 = vst [vmem:[%s186 + $0x50] sm:$0xff] %v249
        %266 = vst [vmem:[%s186 + $0x58] sm:$0xff] %v250
        %267 = vst [vmem:[%s186 + $0x60] sm:$0xff] %v251
        %268 = vst [vmem:[%s186 + $0x68] sm:$0xff] %v252
        %269 = vst [vmem:[%s186 + $0x70] sm:$0xff] %v253
        %270 = vst [vmem:[%s186 + $0x78] sm:$0xff] %v254
        %s271 = sld [smem:[#allocation2]]
        %v272 = vstv %s271
        %v273 = vmul.f32 %v272, %v239
        %v274 = vmul.f32 %v272, %v240
        %v275 = vmul.f32 %v272, %v241
        %v276 = vmul.f32 %v272, %v242
        %v277 = vmul.f32 %v272, %v243
        %v278 = vmul.f32 %v272, %v244
        %v279 = vmul.f32 %v272, %v245
        %v280 = vmul.f32 %v272, %v246
        %v281 = vmul.f32 %v272, %v247
        %v282 = vmul.f32 %v272, %v248
        %v283 = vmul.f32 %v272, %v249
        %v284 = vmul.f32 %v272, %v250
        %v285 = vmul.f32 %v272, %v251
        %v286 = vmul.f32 %v272, %v252
        %v287 = vmul.f32 %v272, %v253
        %v288 = vmul.f32 %v272, %v254
        %v289 = vmax.f32 %v273, %v277
        %v290 = vmax.f32 %v274, %v278
        %v291 = vmax.f32 %v275, %v279
        %v292 = vmax.f32 %v276, %v280
        %v293 = vmax.f32 %v289, %v281
        %v294 = vmax.f32 %v290, %v282
        %v295 = vmax.f32 %v291, %v283
        %v296 = vmax.f32 %v292, %v284
        %v297 = vmax.f32 %v293, %v285
        %v298 = vmax.f32 %v294, %v286
        %v299 = vmax.f32 %v295, %v287
        %v300 = vmax.f32 %v296, %v288
        %v301 = vmax.f32 %v297, %v298
        %v302 = vmax.f32 %v299, %v300
        %v303 = vmax.f32 %v301, %v302
        %v304 = vrot.slane %v303, 4
        %v305 = vmax.f32 %v303, %v304
        %v306 = vrot.slane %v305, 2
        %v307 = vmax.f32 %v305, %v306
        %v308 = vrot.slane %v307, 1
        %v309 = vmax.f32 %v307, %v308
        %p310 = scmp.eq.s32.totalorder %s23, 0
        // Predicated region
        $region33: #{tpu_custom_call.1} parent=27 // pred_check
          %p311 = pneg %p310
        $region34: #{tpu_custom_call.1} parent=27 // pred_check_branch
          %313 = sbr.rel (%p311) target = $region36
        $region35: #{tpu_custom_call.1} parent=27 // pred_region
          %314 = vst [vmem:[#allocation7] sm:$0x1] %v309
        $region36: #{tpu_custom_call.1} parent=27 // pred_fallthru
          _
        %p315 = scmp.gt.s32.totalorder %s23, 0
        // Predicated region
        $region37: #{tpu_custom_call.1} parent=27 // pred_check
          %p316 = pneg %p315
        $region38: #{tpu_custom_call.1} parent=27 // pred_check_branch
          %318 = sbr.rel (%p316) target = $region40
        $region39: #{tpu_custom_call.1} parent=27 // pred_region
          %v319 = vld [vmem:[#allocation7] sm:$0x1]
          %v320 = vmax.f32 %v319, %v309
          %321 = vst [vmem:[#allocation7] sm:$0x1] %v320
        $region40: #{tpu_custom_call.1} parent=27 // pred_fallthru
          _
        %s322 = sand.u32 %s78, 1
        %s323 = scalar_lea.sflag [#allocation5], %s322
        %s324 = sand.u32 %s78, 1
        %s325 = smul.addr %s324, 128
        %s326 = scalar_lea.vmem [#allocation6], %s325
        // Predicated region
        $region41: #{tpu_custom_call.1} parent=27 // pred_check
          %p327 = pneg %p88
        $region42: #{tpu_custom_call.1} parent=27 // pred_check_branch
          %329 = sbr.rel (%p327) target = $region44
        $region43: #{tpu_custom_call.1} parent=27 // pred_region
          %s330 = smul.u32 16, %s23
          %s332 = ssub.s32 2048, 2048
          %333 = vsyncadd %s323, %s332
          %s334 = smul.addr %s330, 128
          %s335 = scalar_lea.hbm %s2, %s334
          %s336 = sshll.u32 %s326, 4
          %s337 = int_to_ptr.vmem [resolvable:$true] %s336
          %342 = dma.vmem_to_hbm [thread:$0]  %s337, 2048, %s335, %s323, 128, 128, 8
        $region44: #{tpu_custom_call.1} parent=27 // pred_fallthru
          _
        // Predicated region
        $region45: #{tpu_custom_call.1} parent=27 // pred_check
          %p343 = pneg %p109
        $region46: #{tpu_custom_call.1} parent=27 // pred_check_branch
          %345 = sbr.rel (%p343) target = $region48
        $region47: #{tpu_custom_call.1} parent=27 // pred_region
          %s347 = ssub.s32 16, 16
          %348 = vsyncadd [#allocation8], %s347
          %s350 = sshll.u32 [#allocation7], 4
          %s351 = int_to_ptr.vmem [resolvable:$true] %s350
          %353 = dma.vmem_to_hbm [thread:$0]  %s351, 16, %s3, [#allocation8]
        $region48: #{tpu_custom_call.1} parent=27 // pred_fallthru
          _
        // Predicated region
        $region49: #{tpu_custom_call.1} parent=27 // pred_check
          %p354 = pneg %p109
        $region50: #{tpu_custom_call.1} parent=27 // pred_check_branch
          %356 = sbr.rel (%p354) target = $region52
        $region51: #{tpu_custom_call.1} parent=27 // pred_region
          %357 = dma.done [#allocation8], 16
        $region52: #{tpu_custom_call.1} parent=27 // pred_fallthru
          _
      $region28: #{tpu_custom_call.1} parent=5 // pred_fallthru
        _
      %p358 = scmp.le.s32.totalorder 2, %s18
      // Predicated region
      $region53: #{tpu_custom_call.1} parent=5 // pred_check
        %p359 = pneg %p358
      $region54: #{tpu_custom_call.1} parent=5 // pred_check_branch
        %361 = sbr.rel (%p359) target = $region56
      $region55: #{tpu_custom_call.1} parent=5 // pred_region
        %s362 = ssub.s32 %s18, 2
        // Predicated region
        $region57: #{tpu_custom_call.1} parent=55 // pred_check
          %p363 = pneg %p94
        $region58: #{tpu_custom_call.1} parent=55 // pred_check_branch
          %365 = sbr.rel (%p363) target = $region60
        $region59: #{tpu_custom_call.1} parent=55 // pred_region
          %s366 = sand.u32 %s79, 1
          %s367 = scalar_lea.sflag [#allocation5], %s366
          %s368 = sand.u32 %s79, 1
          %s369 = smul.addr %s368, 128
          %s370 = scalar_lea.vmem [#allocation6], %s369
          %371 = dma.done %s367, 2048
        $region60: #{tpu_custom_call.1} parent=55 // pred_fallthru
          _
      $region56: #{tpu_custom_call.1} parent=5 // pred_fallthru
        _
    $region6: #{tpu_custom_call.1} parent=1 // loop_footer
      %s22 = sadd.s32 1, %s18
    $region7: #{tpu_custom_call.1} parent=1 // loop_footer_branch
      %17 = sbr.rel target = $region3
    $region8: #{tpu_custom_call.1} parent=1 // loop_exit
      _
    %372 = vsyncpa [#allocation4], 1
    %s373 = scalar_lea.sflag [#allocation4], 1
    %374 = vsyncpa %s373, 1
    %375 = vsyncpa [#allocation5], 1
    %s376 = scalar_lea.sflag [#allocation5], 1
    %377 = vsyncpa %s376, 1
    %378 = vsyncpa [#allocation8], 1

</llo_original>
